<compile_context>
chip_gen: v7x
topology: tpu7x:2x2x1
jax: 0.10.0
libtpu: 0.0.40
codegen_flags: <defaults>
</compile_context>

<pallas_src>
import functools
import math

import numpy as np
import jax
import jax.numpy as jnp
from jax import lax
from jax.experimental import pallas as pl
from jax.experimental.pallas import tpu as pltpu


def make_smoother_diff(n_pixels: int, smoother: str = "linear") -> np.ndarray:
    """Deterministic 'parameter' buffer, mirrors BlurOutwards.__init__."""
    if smoother == "sigmoid":
        s = 1.0 / (1.0 + np.exp(-np.linspace(-5.0, 5.0, n_pixels + 1)))
        s[0] = 0.0
        s[-1] = 1.0
    elif smoother == "linear":
        s = np.linspace(0.0, 1.0, n_pixels + 1)
    else:
        raise NotImplementedError(f"'{smoother}' smoothing method is not implemented.")
    return np.diff(s.astype(np.float32)).astype(np.float32)


def _blur_outwards_kernel(x_ref, o_ref, *, coeffs, H, W):
    # x_ref/o_ref: (TB, H, K*W) lane-packed tiles. K planes share the lane axis;
    # the per-plane column (col % W) keeps shifts from crossing plane borders.
    TB, _, KW = x_ref.shape
    x = x_ref[...]
    # Keep the max chain narrow for bf16 inputs (max is exact in bf16);
    # accumulate `out` in f32 regardless.
    chain_dtype = jnp.bfloat16 if x.dtype == jnp.bfloat16 else jnp.float32
    cur = x.astype(chain_dtype)
    zero = jnp.zeros((), chain_dtype)

    # Loop-invariant boundary masks (hoisted out of the n_pixels loop).
    shape = (TB, H, KW)
    row = lax.broadcasted_iota(jnp.int32, shape, 1)
    col = lax.broadcasted_iota(jnp.int32, shape, 2) % W  # per packed plane
    from_above_ok = row >= 1          # reads cur[i-1, j]
    from_below_ok = row < (H - 1)     # reads cur[i+1, j]
    from_left_ok = col >= 1           # reads v[i, j-1]
    from_right_ok = col < (W - 1)     # reads v[i, j+1]

    n = len(coeffs)
    # For the 'linear' smoother all coefficients are identical: factor the
    # scale out of the accumulation and apply it once at the end.
    uniform = n > 0 and all(c == coeffs[0] for c in coeffs)

    out = jnp.zeros(shape, jnp.float32)
    # TODO(synk): for very large n_pixels switch this unrolled loop to
    # lax.fori_loop with SMEM-indexed coefficients to bound code size.
    for i in range(n):
        term = cur.astype(jnp.float32)
        out = out + (term if uniform else coeffs[i] * term)
        if i + 1 < n:  # the final dilation in the PyTorch loop is never read
            # Separable 3x3 zero-padded dilation: vertical 3-max, then horizontal.
            up = jnp.where(from_above_ok, jnp.roll(cur, 1, axis=1), zero)
            dn = jnp.where(from_below_ok, jnp.roll(cur, -1, axis=1), zero)
            v = jnp.maximum(jnp.maximum(up, dn), cur)
            lf = jnp.where(from_left_ok, jnp.roll(v, 1, axis=2), zero)
            rt = jnp.where(from_right_ok, jnp.roll(v, -1, axis=2), zero)
            cur = jnp.maximum(jnp.maximum(lf, rt), v)
    if uniform:
        out = out * coeffs[0]
    o_ref[...] = out.astype(o_ref.dtype)


def _choose_batch(G, plane_bytes, target_bytes):
    """Largest divisor TB of G with TB*plane_bytes <= target; prefer >=2 grid steps."""
    best = 1
    for tb in range(1, G + 1):
        if G % tb == 0 and tb * plane_bytes <= target_bytes:
            best = tb
    if best == G and G > 1:
        # keep at least two grid steps so both v7x TensorCores get work
        for tb in range(G // 2, 0, -1):
            if G % tb == 0:
                best = tb
                break
    return best


@functools.partial(jax.jit, static_argnums=(1, 2, 3, 4))
def blur_outwards(x, n_pixels: int, smoother: str = "linear",
                  lane_target: int = 128, tile_byte_target: int = 1 << 20):
    """Pallas TPU implementation of BlurOutwards.forward for NCHW input."""
    N, C, H, W = x.shape
    coeffs = tuple(float(v) for v in make_smoother_diff(n_pixels, smoother))
    P = N * C

    # Pack K planes along the lane axis so the block's last dim is lane-dense.
    if W < lane_target and lane_target % W == 0:
        K = math.gcd(P, lane_target // W)
    else:
        K = 1
    G = P // K
    KW = K * W

    # (N*C, H, W) -> (G, K, H, W) -> (G, H, K, W) -> (G, H, K*W): layout plumbing only.
    xp = x.reshape(G, K, H, W).transpose(0, 2, 1, 3).reshape(G, H, KW)

    plane_bytes = H * KW * x.dtype.itemsize
    TB = _choose_batch(G, plane_bytes, tile_byte_target)
    # TODO(synk): for very large single planes (H*W f32 >> 1 MiB) tile H as well
    # with an n_pixels-row halo instead of loading the whole plane per step.

    # Explicit VMEM budget: double-buffered in/out tiles + f32 dilation working
    # set; capped so it fits v7x's 64 MiB physical VMEM with headroom.
    tile_f32 = TB * H * KW * 4
    vmem_limit = int(min(32 * 2 ** 20, max(16 * 2 ** 20, 24 * tile_f32)))

    kernel = functools.partial(_blur_outwards_kernel, coeffs=coeffs, H=H, W=W)
    out = pl.pallas_call(
        kernel,
        out_shape=jax.ShapeDtypeStruct((G, H, KW), x.dtype),
        grid_spec=pltpu.PrefetchScalarGridSpec(
            num_scalar_prefetch=0,
            grid=(G // TB,),
            in_specs=[pl.BlockSpec((TB, H, KW), lambda g: (g, 0, 0))],
            out_specs=pl.BlockSpec((TB, H, KW), lambda g: (g, 0, 0)),
        ),
        compiler_params=pltpu.CompilerParams(
            dimension_semantics=("parallel",),
            vmem_limit_bytes=vmem_limit,
        ),
    )(xp)

    return out.reshape(G, H, K, W).transpose(0, 2, 1, 3).reshape(N, C, H, W)


def blur_outwards_reference(x, n_pixels: int, smoother: str = "linear"):
    """Pure-JAX reference mirroring the PyTorch forward (verification only)."""
    d = jnp.asarray(make_smoother_diff(n_pixels, smoother))
    out = jnp.zeros(x.shape, jnp.float32)
    cur = x.astype(jnp.float32)
    for i in range(n_pixels):
        out = out + d[i] * cur
        padded = jnp.pad(cur, ((0, 0), (0, 0), (1, 1), (1, 1)))  # zero pad, like f.pad
        cur = lax.reduce_window(padded, -jnp.inf, lax.max,
                                (1, 1, 3, 3), (1, 1, 1, 1), "VALID")
    return out.astype(x.dtype)


if __name__ == "__main__":
    key = jax.random.PRNGKey(0)

    # Main test: lane-packed path (K = 8 planes per 128-lane block), linear smoother.
    N, C, H, W = 2, 4, 16, 16
    n_pixels = 4
    x = jax.random.normal(key, (N, C, H, W), dtype=jnp.float32)
    y = jax.block_until_ready(blur_outwards(x, n_pixels, "linear"))
    y_ref = blur_outwards_reference(x, n_pixels, "linear")
    assert y.shape == x.shape and y.dtype == x.dtype
    np.testing.assert_allclose(np.asarray(y), np.asarray(y_ref), rtol=1e-5, atol=1e-5)

    # Secondary test: unpacked path (W does not divide 128), sigmoid smoother.
    x2 = jax.random.normal(jax.random.PRNGKey(1), (1, 1, 8, 20), dtype=jnp.float32)
    y2 = jax.block_until_ready(blur_outwards(x2, 3, "sigmoid"))
    y2_ref = blur_outwards_reference(x2, 3, "sigmoid")
    np.testing.assert_allclose(np.asarray(y2), np.asarray(y2_ref), rtol=1e-5, atol=1e-5)

    print("KERNEL_OK")
</pallas_src>

<mosaic_0001>
module attributes {stable_mosaic.version = 11 : i64} {
  func.func @_blur_outwards_kernel(%arg0: i32, %arg1: memref<1x16x128xf32, #tpu.memory_space<vmem>>, %arg2: memref<1x16x128xf32, #tpu.memory_space<vmem>>) attributes {dimension_semantics = [#tpu.dimension_semantics<parallel>], iteration_bounds = array<i64: 1>, scalar_prefetch = 0 : i64, scratch_operands = 0 : i64, tpu.core_type = #tpu.core_type<tc>, window_params = [{transform_indices = @transform_0, window_bounds = array<i64: 1, 16, 128>}, {transform_indices = @transform_1, window_bounds = array<i64: 1, 16, 128>}]} {
    %c0 = arith.constant 0 : index
    %c0_0 = arith.constant 0 : index
    %c0_1 = arith.constant 0 : index
    %0 = vector.load %arg1[%c0, %c0_0, %c0_1] : memref<1x16x128xf32, #tpu.memory_space<vmem>>, vector<1x16x128xf32>
    %1 = tpu.iota {dimensions = array<i32: 1>} : vector<1x16x128xi32>
    %2 = tpu.iota {dimensions = array<i32: 2>} : vector<1x16x128xi32>
    %c16_i32 = arith.constant 16 : i32
    %c0_i32 = arith.constant 0 : i32
    %3 = arith.cmpi eq, %c16_i32, %c0_i32 : i32
    %c1_i32 = arith.constant 1 : i32
    %4 = arith.select %3, %c1_i32, %c16_i32 : i32
    %5 = vector.broadcast %4 : i32 to vector<1x16x128xi32>
    %6 = arith.remsi %2, %5 : vector<1x16x128xi32>
    %c0_i32_2 = arith.constant 0 : i32
    %7 = vector.broadcast %c0_i32_2 : i32 to vector<1x16x128xi32>
    %8 = arith.cmpi ne, %6, %7 : vector<1x16x128xi32>
    %c0_i32_3 = arith.constant 0 : i32
    %9 = vector.broadcast %c0_i32_3 : i32 to vector<1x16x128xi32>
    %10 = arith.cmpi slt, %6, %9 : vector<1x16x128xi32>
    %c0_i32_4 = arith.constant 0 : i32
    %11 = arith.cmpi slt, %4, %c0_i32_4 : i32
    %12 = vector.broadcast %11 : i1 to vector<1x16x128xi1>
    %13 = vector.broadcast %12 : vector<1x16x128xi1> to vector<1x16x128xi1>
    %14 = arith.xori %10, %13 : vector<1x16x128xi1>
    %15 = arith.andi %14, %8 : vector<1x16x128xi1>
    %16 = vector.broadcast %4 : i32 to vector<1x16x128xi32>
    %17 = arith.addi %6, %16 : vector<1x16x128xi32>
    %18 = arith.select %15, %17, %6 : vector<1x16x128xi1>, vector<1x16x128xi32>
    %c1_i32_5 = arith.constant 1 : i32
    %19 = vector.broadcast %c1_i32_5 : i32 to vector<1x16x128xi32>
    %20 = arith.cmpi sge, %1, %19 : vector<1x16x128xi32>
    %c15_i32 = arith.constant 15 : i32
    %21 = vector.broadcast %c15_i32 : i32 to vector<1x16x128xi32>
    %22 = arith.cmpi slt, %1, %21 : vector<1x16x128xi32>
    %c1_i32_6 = arith.constant 1 : i32
    %23 = vector.broadcast %c1_i32_6 : i32 to vector<1x16x128xi32>
    %24 = arith.cmpi sge, %18, %23 : vector<1x16x128xi32>
    %c15_i32_7 = arith.constant 15 : i32
    %25 = vector.broadcast %c15_i32_7 : i32 to vector<1x16x128xi32>
    %26 = arith.cmpi slt, %18, %25 : vector<1x16x128xi32>
    %cst = arith.constant 0.000000e+00 : f32
    %27 = vector.broadcast %cst : f32 to vector<1x16x128xf32>
    %28 = arith.addf %27, %0 : vector<1x16x128xf32>
    %29 = vector.extract_strided_slice %0 {offsets = [0, 15, 0], sizes = [1, 1, 128], strides = [1, 1, 1]} : vector<1x16x128xf32> to vector<1x1x128xf32>
    %30 = vector.extract_strided_slice %0 {offsets = [0, 0, 0], sizes = [1, 15, 128], strides = [1, 1, 1]} : vector<1x16x128xf32> to vector<1x15x128xf32>
    %31 = tpu.concatenate %29, %30 in 1 : vector<1x1x128xf32>, vector<1x15x128xf32> -> vector<1x16x128xf32>
    %cst_8 = arith.constant 0.000000e+00 : f32
    %32 = vector.broadcast %cst_8 : f32 to vector<1x16x128xf32>
    %33 = arith.select %20, %31, %32 : vector<1x16x128xi1>, vector<1x16x128xf32>
    %34 = vector.extract_strided_slice %0 {offsets = [0, 1, 0], sizes = [1, 15, 128], strides = [1, 1, 1]} : vector<1x16x128xf32> to vector<1x15x128xf32>
    %35 = vector.extract_strided_slice %0 {offsets = [0, 0, 0], sizes = [1, 1, 128], strides = [1, 1, 1]} : vector<1x16x128xf32> to vector<1x1x128xf32>
    %36 = tpu.concatenate %34, %35 in 1 : vector<1x15x128xf32>, vector<1x1x128xf32> -> vector<1x16x128xf32>
    %cst_9 = arith.constant 0.000000e+00 : f32
    %37 = vector.broadcast %cst_9 : f32 to vector<1x16x128xf32>
    %38 = arith.select %22, %36, %37 : vector<1x16x128xi1>, vector<1x16x128xf32>
    %39 = arith.maximumf %33, %38 : vector<1x16x128xf32>
    %40 = arith.maximumf %39, %0 : vector<1x16x128xf32>
    %41 = vector.extract_strided_slice %40 {offsets = [0, 0, 127], sizes = [1, 16, 1], strides = [1, 1, 1]} : vector<1x16x128xf32> to vector<1x16x1xf32>
    %42 = vector.extract_strided_slice %40 {offsets = [0, 0, 0], sizes = [1, 16, 127], strides = [1, 1, 1]} : vector<1x16x128xf32> to vector<1x16x127xf32>
    %43 = tpu.concatenate %41, %42 in 2 : vector<1x16x1xf32>, vector<1x16x127xf32> -> vector<1x16x128xf32>
    %cst_10 = arith.constant 0.000000e+00 : f32
    %44 = vector.broadcast %cst_10 : f32 to vector<1x16x128xf32>
    %45 = arith.select %24, %43, %44 : vector<1x16x128xi1>, vector<1x16x128xf32>
    %46 = vector.extract_strided_slice %40 {offsets = [0, 0, 1], sizes = [1, 16, 127], strides = [1, 1, 1]} : vector<1x16x128xf32> to vector<1x16x127xf32>
    %47 = vector.extract_strided_slice %40 {offsets = [0, 0, 0], sizes = [1, 16, 1], strides = [1, 1, 1]} : vector<1x16x128xf32> to vector<1x16x1xf32>
    %48 = tpu.concatenate %46, %47 in 2 : vector<1x16x127xf32>, vector<1x16x1xf32> -> vector<1x16x128xf32>
    %cst_11 = arith.constant 0.000000e+00 : f32
    %49 = vector.broadcast %cst_11 : f32 to vector<1x16x128xf32>
    %50 = arith.select %26, %48, %49 : vector<1x16x128xi1>, vector<1x16x128xf32>
    %51 = arith.maximumf %45, %50 : vector<1x16x128xf32>
    %52 = arith.maximumf %51, %40 : vector<1x16x128xf32>
    %53 = arith.addf %28, %52 : vector<1x16x128xf32>
    %54 = vector.extract_strided_slice %52 {offsets = [0, 15, 0], sizes = [1, 1, 128], strides = [1, 1, 1]} : vector<1x16x128xf32> to vector<1x1x128xf32>
    %55 = vector.extract_strided_slice %52 {offsets = [0, 0, 0], sizes = [1, 15, 128], strides = [1, 1, 1]} : vector<1x16x128xf32> to vector<1x15x128xf32>
    %56 = tpu.concatenate %54, %55 in 1 : vector<1x1x128xf32>, vector<1x15x128xf32> -> vector<1x16x128xf32>
    %cst_12 = arith.constant 0.000000e+00 : f32
    %57 = vector.broadcast %cst_12 : f32 to vector<1x16x128xf32>
    %58 = arith.select %20, %56, %57 : vector<1x16x128xi1>, vector<1x16x128xf32>
    %59 = vector.extract_strided_slice %52 {offsets = [0, 1, 0], sizes = [1, 15, 128], strides = [1, 1, 1]} : vector<1x16x128xf32> to vector<1x15x128xf32>
    %60 = vector.extract_strided_slice %52 {offsets = [0, 0, 0], sizes = [1, 1, 128], strides = [1, 1, 1]} : vector<1x16x128xf32> to vector<1x1x128xf32>
    %61 = tpu.concatenate %59, %60 in 1 : vector<1x15x128xf32>, vector<1x1x128xf32> -> vector<1x16x128xf32>
    %cst_13 = arith.constant 0.000000e+00 : f32
    %62 = vector.broadcast %cst_13 : f32 to vector<1x16x128xf32>
    %63 = arith.select %22, %61, %62 : vector<1x16x128xi1>, vector<1x16x128xf32>
    %64 = arith.maximumf %58, %63 : vector<1x16x128xf32>
    %65 = arith.maximumf %64, %52 : vector<1x16x128xf32>
    %66 = vector.extract_strided_slice %65 {offsets = [0, 0, 127], sizes = [1, 16, 1], strides = [1, 1, 1]} : vector<1x16x128xf32> to vector<1x16x1xf32>
    %67 = vector.extract_strided_slice %65 {offsets = [0, 0, 0], sizes = [1, 16, 127], strides = [1, 1, 1]} : vector<1x16x128xf32> to vector<1x16x127xf32>
    %68 = tpu.concatenate %66, %67 in 2 : vector<1x16x1xf32>, vector<1x16x127xf32> -> vector<1x16x128xf32>
    %cst_14 = arith.constant 0.000000e+00 : f32
    %69 = vector.broadcast %cst_14 : f32 to vector<1x16x128xf32>
    %70 = arith.select %24, %68, %69 : vector<1x16x128xi1>, vector<1x16x128xf32>
    %71 = vector.extract_strided_slice %65 {offsets = [0, 0, 1], sizes = [1, 16, 127], strides = [1, 1, 1]} : vector<1x16x128xf32> to vector<1x16x127xf32>
    %72 = vector.extract_strided_slice %65 {offsets = [0, 0, 0], sizes = [1, 16, 1], strides = [1, 1, 1]} : vector<1x16x128xf32> to vector<1x16x1xf32>
    %73 = tpu.concatenate %71, %72 in 2 : vector<1x16x127xf32>, vector<1x16x1xf32> -> vector<1x16x128xf32>
    %cst_15 = arith.constant 0.000000e+00 : f32
    %74 = vector.broadcast %cst_15 : f32 to vector<1x16x128xf32>
    %75 = arith.select %26, %73, %74 : vector<1x16x128xi1>, vector<1x16x128xf32>
    %76 = arith.maximumf %70, %75 : vector<1x16x128xf32>
    %77 = arith.maximumf %76, %65 : vector<1x16x128xf32>
    %78 = arith.addf %53, %77 : vector<1x16x128xf32>
    %79 = vector.extract_strided_slice %77 {offsets = [0, 15, 0], sizes = [1, 1, 128], strides = [1, 1, 1]} : vector<1x16x128xf32> to vector<1x1x128xf32>
    %80 = vector.extract_strided_slice %77 {offsets = [0, 0, 0], sizes = [1, 15, 128], strides = [1, 1, 1]} : vector<1x16x128xf32> to vector<1x15x128xf32>
    %81 = tpu.concatenate %79, %80 in 1 : vector<1x1x128xf32>, vector<1x15x128xf32> -> vector<1x16x128xf32>
    %cst_16 = arith.constant 0.000000e+00 : f32
    %82 = vector.broadcast %cst_16 : f32 to vector<1x16x128xf32>
    %83 = arith.select %20, %81, %82 : vector<1x16x128xi1>, vector<1x16x128xf32>
    %84 = vector.extract_strided_slice %77 {offsets = [0, 1, 0], sizes = [1, 15, 128], strides = [1, 1, 1]} : vector<1x16x128xf32> to vector<1x15x128xf32>
    %85 = vector.extract_strided_slice %77 {offsets = [0, 0, 0], sizes = [1, 1, 128], strides = [1, 1, 1]} : vector<1x16x128xf32> to vector<1x1x128xf32>
    %86 = tpu.concatenate %84, %85 in 1 : vector<1x15x128xf32>, vector<1x1x128xf32> -> vector<1x16x128xf32>
    %cst_17 = arith.constant 0.000000e+00 : f32
    %87 = vector.broadcast %cst_17 : f32 to vector<1x16x128xf32>
    %88 = arith.select %22, %86, %87 : vector<1x16x128xi1>, vector<1x16x128xf32>
    %89 = arith.maximumf %83, %88 : vector<1x16x128xf32>
    %90 = arith.maximumf %89, %77 : vector<1x16x128xf32>
    %91 = vector.extract_strided_slice %90 {offsets = [0, 0, 127], sizes = [1, 16, 1], strides = [1, 1, 1]} : vector<1x16x128xf32> to vector<1x16x1xf32>
    %92 = vector.extract_strided_slice %90 {offsets = [0, 0, 0], sizes = [1, 16, 127], strides = [1, 1, 1]} : vector<1x16x128xf32> to vector<1x16x127xf32>
    %93 = tpu.concatenate %91, %92 in 2 : vector<1x16x1xf32>, vector<1x16x127xf32> -> vector<1x16x128xf32>
    %cst_18 = arith.constant 0.000000e+00 : f32
    %94 = vector.broadcast %cst_18 : f32 to vector<1x16x128xf32>
    %95 = arith.select %24, %93, %94 : vector<1x16x128xi1>, vector<1x16x128xf32>
    %96 = vector.extract_strided_slice %90 {offsets = [0, 0, 1], sizes = [1, 16, 127], strides = [1, 1, 1]} : vector<1x16x128xf32> to vector<1x16x127xf32>
    %97 = vector.extract_strided_slice %90 {offsets = [0, 0, 0], sizes = [1, 16, 1], strides = [1, 1, 1]} : vector<1x16x128xf32> to vector<1x16x1xf32>
    %98 = tpu.concatenate %96, %97 in 2 : vector<1x16x127xf32>, vector<1x16x1xf32> -> vector<1x16x128xf32>
    %cst_19 = arith.constant 0.000000e+00 : f32
    %99 = vector.broadcast %cst_19 : f32 to vector<1x16x128xf32>
    %100 = arith.select %26, %98, %99 : vector<1x16x128xi1>, vector<1x16x128xf32>
    %101 = arith.maximumf %95, %100 : vector<1x16x128xf32>
    %102 = arith.maximumf %101, %90 : vector<1x16x128xf32>
    %103 = arith.addf %78, %102 : vector<1x16x128xf32>
    %cst_20 = arith.constant 2.500000e-01 : f32
    %104 = vector.broadcast %cst_20 : f32 to vector<1x16x128xf32>
    %105 = arith.mulf %103, %104 : vector<1x16x128xf32>
    %c0_21 = arith.constant 0 : index
    %c0_22 = arith.constant 0 : index
    %c0_23 = arith.constant 0 : index
    %106 = vector.load %arg2[%c0_21, %c0_22, %c0_23] : memref<1x16x128xf32, #tpu.memory_space<vmem>>, vector<1x16x128xf32>
    tpu.vector_store %arg2[%c0_21, %c0_22, %c0_23], %105 {strides = array<i32>} : memref<1x16x128xf32, #tpu.memory_space<vmem>>, vector<1x16x128xf32>,
    return
  }
  func.func @transform_0(%arg0: i32) -> (i32, i32, i32) {
    %c0_i32 = arith.constant 0 : i32
    %c0_i32_0 = arith.constant 0 : i32
    %c0_i32_1 = arith.constant 0 : i32
    return %arg0, %c0_i32, %c0_i32_0 : i32, i32, i32
  }
  func.func @transform_1(%arg0: i32) -> (i32, i32, i32) {
    %c0_i32 = arith.constant 0 : i32
    %c0_i32_0 = arith.constant 0 : i32
    %c0_i32_1 = arith.constant 0 : i32
    return %arg0, %c0_i32, %c0_i32_0 : i32, i32, i32
  }
}

</mosaic_0001>

<llo_original>
// kernel: blur_outwards.1
$region0: #{blur_outwards.1}
  #allocation0 [shape = 'u32[]', space=smem, size = 0x4, offset = 0x4, fixed_abs, tag = 'smem constant byte address 0x4 - core index']
  #allocation1 [shape = 'u32[144,128]{1,0:T(1,128)}', space=vmem, size = 0x12000, scoped, tag = 'internal scratch']
  %s0 = inlined_call_operand.vmem [shape: f32[1,16,128], index: 0, kind: input, shape index: {}]
  %s1 = inlined_call_operand.vmem [shape: f32[1,16,128], index: 1, kind: output, shape index: {}]
  %s2 = sld [smem:[#allocation0]]
  $region14: #{blur_outwards.1} parent=0
    _
  %s4 = ssub.s32 1, %s2
  %s5 = scalar_select 0, %s4, %s2
  // Predicated region
  $region2: #{blur_outwards.1} parent=0 // pred_check
    _
  $region3: #{blur_outwards.1} parent=0 // pred_check_branch
    %7 = sbr.rel (0) target = $region5
  $region4: #{blur_outwards.1} parent=0 // pred_region
    _
  $region5: #{blur_outwards.1} parent=0 // pred_fallthru
    _
  %v8 = vld [vmem:[%s0] sm:$0xff]
  %v9 = vld [vmem:[%s0 + $0x8] sm:$0xff]
  %v10 = vlaneseq
  %v11 = vshrl.u32 %v10, 7
  %v12 = vadd.s32 %v11, 8
  %v13 = vlaneseq
  %v14 = vand.u32 %v13, 127
  %vm15 = vcmp.lt.s32.totalorder %v14, 0
  %v16 = vsub.s32 0, %v14
  %v17 = vsel %vm15, %v16, %v14
  %v18 = vshrl.u32 %v17, 4
  %v19 = vand.u32 %v17, 15
  %v20 = vsub.s32 0, %v19
  %v21 = vsel %vm15, %v20, %v19
  %vm22 = vcmp.ne.s32.totalorder %v21, 0
  %vm23 = vcmp.lt.s32.totalorder %v21, 0
  %vm24 = vmand %vm23, %vm22
  %v25 = vadd.s32 %v21, 16
  %v26 = vsel %vm24, %v25, %v21
  %vm27 = vcmp.ge.s32.totalorder %v11, 1
  %vm28 = vcmp.ge.s32.totalorder %v12, 1
  %vm29 = vcmp.lt.s32.totalorder %v11, 15
  %vm30 = vcmp.lt.s32.totalorder %v12, 15
  %vm31 = vcmp.ge.s32.totalorder %v26, 1
  %vm32 = vcmp.lt.s32.totalorder %v26, 15
  %v33 = vadd.f32 %v8, 0.0
  %v34 = vadd.f32 %v9, 0.0
  %v36 = vrot.slane %v9, 7
  %vm39 = vcmask 1040384
  %v40 = vrot.slane %v8, 7
  %v41 = vsel %vm39, %v40, %v36
  %v44 = vsel %vm39, %v36, %v40
  %v45 = vsel %vm27, %v44, 0.0
  %v46 = vsel %vm28, %v41, 0.0
  %vm47 = vcmask 1046528
  %v48 = vrot.slane %v8, 1
  %v49 = vrot.slane %v9, 1
  %v50 = vsel %vm47, %v48, %v49
  %v54 = vsel %vm47, %v49, %v48
  %v55 = vsel %vm29, %v50, 0.0
  %v56 = vsel %vm30, %v54, 0.0
  %v57 = vmax.f32 %v45, %v55
  %v58 = vmax.f32 %v46, %v56
  %v59 = vmax.f32 %v57, %v8
  %v60 = vmax.f32 %v58, %v9
  %63 = vrot.lane.b32.xlu0 %v59, 1
  %v64 = vpop.permute.xlu0 %63
  %65 = vrot.lane.b32.xlu0 %v60, 1
  %v66 = vpop.permute.xlu0 %65
  %v69 = vsel %vm31, %v64, 0.0
  %v70 = vsel %vm31, %v66, 0.0
  %71 = vrot.lane.b32.xlu0 %v59, 127
  %v72 = vpop.permute.xlu0 %71
  %73 = vrot.lane.b32.xlu0 %v60, 127
  %v74 = vpop.permute.xlu0 %73
  %v77 = vsel %vm32, %v72, 0.0
  %v78 = vsel %vm32, %v74, 0.0
  %v79 = vmax.f32 %v69, %v77
  %v80 = vmax.f32 %v70, %v78
  %v81 = vmax.f32 %v79, %v59
  %v82 = vmax.f32 %v80, %v60
  %v83 = vadd.f32 %v33, %v81
  %v84 = vadd.f32 %v34, %v82
  %v86 = vrot.slane %v82, 7
  %v89 = vrot.slane %v81, 7
  %v90 = vsel %vm39, %v89, %v86
  %v93 = vsel %vm39, %v86, %v89
  %v94 = vsel %vm27, %v93, 0.0
  %v95 = vsel %vm28, %v90, 0.0
  %v96 = vrot.slane %v81, 1
  %v97 = vrot.slane %v82, 1
  %v98 = vsel %vm47, %v96, %v97
  %v102 = vsel %vm47, %v97, %v96
  %v103 = vsel %vm29, %v98, 0.0
  %v104 = vsel %vm30, %v102, 0.0
  %v105 = vmax.f32 %v94, %v103
  %v106 = vmax.f32 %v95, %v104
  %v107 = vmax.f32 %v105, %v81
  %v108 = vmax.f32 %v106, %v82
  %111 = vrot.lane.b32.xlu0 %v107, 1
  %v112 = vpop.permute.xlu0 %111
  %113 = vrot.lane.b32.xlu0 %v108, 1
  %v114 = vpop.permute.xlu0 %113
  %v117 = vsel %vm31, %v112, 0.0
  %v118 = vsel %vm31, %v114, 0.0
  %119 = vrot.lane.b32.xlu0 %v107, 127
  %v120 = vpop.permute.xlu0 %119
  %121 = vrot.lane.b32.xlu0 %v108, 127
  %v122 = vpop.permute.xlu0 %121
  %v125 = vsel %vm32, %v120, 0.0
  %v126 = vsel %vm32, %v122, 0.0
  %v127 = vmax.f32 %v117, %v125
  %v128 = vmax.f32 %v118, %v126
  %v129 = vmax.f32 %v127, %v107
  %v130 = vmax.f32 %v128, %v108
  %v131 = vadd.f32 %v83, %v129
  %v132 = vadd.f32 %v84, %v130
  %v134 = vrot.slane %v130, 7
  %v137 = vrot.slane %v129, 7
  %v138 = vsel %vm39, %v137, %v134
  %v141 = vsel %vm39, %v134, %v137
  %v142 = vsel %vm27, %v141, 0.0
  %v143 = vsel %vm28, %v138, 0.0
  %v144 = vrot.slane %v129, 1
  %v145 = vrot.slane %v130, 1
  %v146 = vsel %vm47, %v144, %v145
  %v150 = vsel %vm47, %v145, %v144
  %v151 = vsel %vm29, %v146, 0.0
  %v152 = vsel %vm30, %v150, 0.0
  %v153 = vmax.f32 %v142, %v151
  %v154 = vmax.f32 %v143, %v152
  %v155 = vmax.f32 %v153, %v129
  %v156 = vmax.f32 %v154, %v130
  %159 = vrot.lane.b32.xlu0 %v155, 1
  %v160 = vpop.permute.xlu0 %159
  %161 = vrot.lane.b32.xlu0 %v156, 1
  %v162 = vpop.permute.xlu0 %161
  %v165 = vsel %vm31, %v160, 0.0
  %v166 = vsel %vm31, %v162, 0.0
  %167 = vrot.lane.b32.xlu0 %v155, 127
  %v168 = vpop.permute.xlu0 %167
  %169 = vrot.lane.b32.xlu0 %v156, 127
  %v170 = vpop.permute.xlu0 %169
  %v173 = vsel %vm32, %v168, 0.0
  %v174 = vsel %vm32, %v170, 0.0
  %v175 = vmax.f32 %v165, %v173
  %v176 = vmax.f32 %v166, %v174
  %v177 = vmax.f32 %v175, %v155
  %v178 = vmax.f32 %v176, %v156
  %v179 = vadd.f32 %v131, %v177
  %v180 = vadd.f32 %v132, %v178
  %v181 = vmul.f32 %v179, 0.25
  %v182 = vmul.f32 %v180, 0.25
  %183 = vst [vmem:[%s1] sm:$0xff] %v181
  %184 = vst [vmem:[%s1 + $0x8] sm:$0xff] %v182
  // Predicated region
  $region6: #{blur_outwards.1} parent=0 // pred_check
    _
  $region7: #{blur_outwards.1} parent=0 // pred_check_branch
    %186 = sbr.rel (0) target = $region9
  $region8: #{blur_outwards.1} parent=0 // pred_region
    _
  $region9: #{blur_outwards.1} parent=0 // pred_fallthru
    _
  // Predicated region
  $region10: #{blur_outwards.1} parent=0 // pred_check
    _
  $region11: #{blur_outwards.1} parent=0 // pred_check_branch
    %188 = sbr.rel (0) target = $region13
  $region12: #{blur_outwards.1} parent=0 // pred_region
    _
  $region13: #{blur_outwards.1} parent=0 // pred_fallthru
    _

</llo_original>
